<compile_context>
chip_gen: v6e
topology: v6e:2x2x1
jax: 0.10.0
libtpu: 0.0.40
codegen_flags: <defaults>
</compile_context>

<pallas_src>
import functools
import math

import jax
import jax.numpy as jnp
import numpy as np
from jax import lax
from jax.experimental import pallas as pl
from jax.experimental.pallas import tpu as pltpu

_LANE = 128
_CHUNK = 8          # sublane rows (i.e. pairs / 128) processed per inner step


def _asf_kernel(r_ref, out_ref, *, cutoff, eta, zeta, shfa, cos_shfz,
                sin_shfz, n_chunks):
    # r_ref:   (6, mt, 128)    rows 0..2 = v0 xyz, rows 3..5 = v1 xyz
    # out_ref: (A*Z, mt, 128)  row index = a*Z + z   (torch flatten order)
    pi_over_rc = math.pi / cutoff
    Z = len(cos_shfz)
    A = len(shfa)

    # Non-unrolled inner loop over (8,128) pair chunks bounds live vregs
    # (~15-20) so the big 8192-pair tile never spills.
    @pl.loop(0, n_chunks)
    def _(ci):
        row0 = pl.multiple_of(ci * _CHUNK, _CHUNK)
        rows = pl.ds(row0, _CHUNK)

        x0 = r_ref[0, rows, :]
        y0 = r_ref[1, rows, :]
        z0 = r_ref[2, rows, :]
        x1 = r_ref[3, rows, :]
        y1 = r_ref[4, rows, :]
        z1 = r_ref[5, rows, :]

        # Unrolled component MADs (pure VPU on dense (8,128) vregs).
        sq0 = jnp.maximum(x0 * x0 + y0 * y0 + z0 * z0, 1e-12)
        sq1 = jnp.maximum(x1 * x1 + y1 * y1 + z1 * z1, 1e-12)
        dot = x0 * x1 + y0 * y1 + z0 * z1

        # Exact rsqrt (EUP): d = |v|, and 1/(d0*d1) = rs0*rs1 comes for free.
        rs0 = lax.rsqrt(sq0)
        rs1 = lax.rsqrt(sq1)
        d0 = sq0 * rs0
        d1 = sq1 * rs1
        dsum = 0.5 * (d0 + d1)

        # Behler cosine cutoff; min() replaces the (d < rc) compare/convert/
        # mask-multiply because cos(pi) = -1 at and beyond the cutoff.
        fc0 = 0.5 * (jnp.cos(jnp.minimum(d0, cutoff) * pi_over_rc) + 1.0)
        fc1 = 0.5 * (jnp.cos(jnp.minimum(d1, cutoff) * pi_over_rc) + 1.0)
        fcj2 = 2.0 * fc0 * fc1          # fused with the final factor of 2

        # 0.95 * cosine similarity; cos(angle - ShfZ) expanded with the
        # angle-addition identity (angle in [0, pi] => sin >= 0), no acos.
        cos_ang = 0.95 * dot * (rs0 * rs1)
        sin_ang = jnp.sqrt(jnp.maximum(1.0 - cos_ang * cos_ang, 0.0))

        # factor1 per ShfZ (Z rows of log+exp), pre-multiplied by 2*fc0*fc1.
        f1fc = []
        for zi in range(Z):
            cd = cos_ang * cos_shfz[zi] + sin_ang * sin_shfz[zi]
            base = jnp.maximum(0.5 * (1.0 + cd), 1e-30)   # keep log finite
            f1fc.append(jnp.exp(zeta * jnp.log(base)) * fcj2)

        # factor2 per ShfA (A rows of exp); combine + dense (8,128) stores.
        for ai in range(A):
            dd = dsum - shfa[ai]
            f2 = jnp.exp(-eta * dd * dd)
            for zi in range(Z):
                out_ref[ai * Z + zi, rows, :] = (
                    f1fc[zi] * f2).astype(out_ref.dtype)


class AngularSymmetryFunctionPallas:
    """JAX/Pallas port of modelforge AngularSymmetryFunction (trainable=False)."""

    def __init__(self, maximum_interaction_radius: float, min_distance: float,
                 number_of_gaussians_for_asf: int = 8, angle_sections: int = 4):
        self.cutoff = float(maximum_interaction_radius)
        self.eta = 12.5 * 100.0           # EtaA
        self.zeta = 14.1                  # Zeta
        angle_start = math.pi / (2 * angle_sections)
        shfz = (np.linspace(0.0, math.pi, angle_sections + 1) + angle_start)[:-1]
        shfa = np.linspace(float(min_distance), float(maximum_interaction_radius),
                           number_of_gaussians_for_asf + 1)[:-1]
        self.ShfZ = jnp.asarray(shfz, jnp.float32)            # (Z,)
        self.ShfA = jnp.asarray(shfa, jnp.float32)            # (A,)
        self.A = int(shfa.size)
        self.Z = int(shfz.size)
        self.angular_sublength = self.A * self.Z

        # Compile-time scalar constants baked into the kernel (no DMA'd consts).
        self._shfa_t = tuple(float(v) for v in shfa)
        self._cos_shfz_t = tuple(float(np.cos(v)) for v in shfz)
        self._sin_shfz_t = tuple(float(np.sin(v)) for v in shfz)

    def __call__(self, r_ij: jax.Array, *, tile_n: int = 8192,
                 out_dtype=jnp.float32, feature_major: bool = False) -> jax.Array:
        assert r_ij.ndim == 3 and r_ij.shape[0] == 2 and r_ij.shape[2] == 3
        n_pairs = r_ij.shape[1]
        W = self.angular_sublength

        def _round_up(v, m):
            return -(-v // m) * m

        # ---- tiling: big tiles (amortise per-step overhead), >= 2 grid steps
        # when possible so both v7x TensorCores get work. -------------------
        min_tile = _CHUNK * _LANE                                   # 1024 pairs
        n_pad = _round_up(n_pairs, min_tile)
        tile = min(max(int(tile_n) // min_tile, 1) * min_tile, n_pad)
        if tile >= n_pad and n_pad > min_tile:
            tile = _round_up(n_pad // 2, min_tile)                  # ~2 steps
        n_total = _round_up(n_pad, tile)
        mt = tile // _LANE
        M = n_total // _LANE
        grid = (n_total // tile,)
        n_chunks = mt // _CHUNK

        # ---- input relayout: [2, n, 3] -> (6, M, 128), pairs on lanes ------
        r6 = jnp.transpose(r_ij.astype(jnp.float32), (0, 2, 1)).reshape(6, n_pairs)
        if n_total != n_pairs:
            r6 = jnp.pad(r6, ((0, 0), (0, n_total - n_pairs)))
        r6 = r6.reshape(6, M, _LANE)

        kernel = functools.partial(
            _asf_kernel, cutoff=self.cutoff, eta=self.eta, zeta=self.zeta,
            shfa=self._shfa_t, cos_shfz=self._cos_shfz_t,
            sin_shfz=self._sin_shfz_t, n_chunks=n_chunks)

        out = pl.pallas_call(
            kernel,
            out_shape=jax.ShapeDtypeStruct((W, M, _LANE), out_dtype),
            grid_spec=pltpu.PrefetchScalarGridSpec(
                num_scalar_prefetch=0,
                grid=grid,
                in_specs=[pl.BlockSpec((6, mt, _LANE), lambda i: (0, i, 0))],
                out_specs=pl.BlockSpec((W, mt, _LANE), lambda i: (0, i, 0)),
            ),
            compiler_params=pltpu.CompilerParams(
                dimension_semantics=("parallel",)),
        )(r6)

        out = out.reshape(W, n_total)        # free merge of minor dims
        if feature_major:
            # Kernel-native layout (A*Z, n_pairs): no transpose at all.
            return out[:, :n_pairs]
        # torch layout [n_pairs, A*Z] (A-major, Z-minor).  The transpose is
        # one extra HBM pass over the output (see TODO at top of file).
        return jnp.transpose(out[:, :n_pairs])


def reference_jax(r_ij, cutoff, eta, zeta, ShfA, ShfZ):
    """Plain-JAX transcription of the torch forward, for correctness check."""
    v0, v1 = r_ij[0], r_ij[1]
    d12 = jnp.linalg.norm(r_ij, axis=-1)                          # (2, N)
    dsum = d12.sum(0) / 2.0
    fcj = 0.5 * (jnp.cos(d12 * np.pi / cutoff) + 1.0) * (d12 < cutoff)
    fcj_prod = fcj.prod(0)
    cos = 0.95 * jnp.sum(v0 * v1, -1) / jnp.maximum(
        jnp.linalg.norm(v0, axis=-1) * jnp.linalg.norm(v1, axis=-1), 1e-8)
    ang = jnp.arccos(cos)
    factor1 = ((1.0 + jnp.cos(ang[:, None] - ShfZ[None, :])) / 2.0) ** zeta  # (N,Z)
    factor2 = jnp.exp(-eta * (dsum[:, None] - ShfA[None, :]) ** 2)           # (N,A)
    ret = 2.0 * factor1[:, None, :] * factor2[:, :, None] * fcj_prod[:, None, None]
    return ret.reshape(ret.shape[0], -1)                                     # (N, A*Z)


if __name__ == "__main__":
    asf = AngularSymmetryFunctionPallas(
        maximum_interaction_radius=0.5,   # nm
        min_distance=0.05,                # nm
        number_of_gaussians_for_asf=8,
        angle_sections=4,
    )

    # Small deterministic case.
    n_pairs = 128
    r_ij = 0.2 * jax.random.normal(jax.random.PRNGKey(0), (2, n_pairs, 3),
                                   dtype=jnp.float32)
    out = jax.block_until_ready(asf(r_ij))
    assert out.shape == (n_pairs, asf.angular_sublength), out.shape
    ref = reference_jax(r_ij, asf.cutoff, asf.eta, asf.zeta, asf.ShfA, asf.ShfZ)
    np.testing.assert_allclose(np.asarray(out), np.asarray(ref),
                               rtol=2e-2, atol=1e-5)

    # Kernel-native feature-major layout is just the transpose of the same data.
    out_fm = jax.block_until_ready(asf(r_ij, feature_major=True))
    np.testing.assert_array_equal(np.asarray(out_fm), np.asarray(out).T)

    # Padded, multi-step grid (2 parallel steps -> both v7x cores), multi-chunk.
    n_pairs2 = 2500
    r_ij2 = 0.2 * jax.random.normal(jax.random.PRNGKey(1),
                                    (2, n_pairs2, 3), dtype=jnp.float32)
    out2 = jax.block_until_ready(asf(r_ij2))
    assert out2.shape == (n_pairs2, asf.angular_sublength), out2.shape
    ref2 = reference_jax(r_ij2, asf.cutoff, asf.eta, asf.zeta, asf.ShfA, asf.ShfZ)
    np.testing.assert_allclose(np.asarray(out2), np.asarray(ref2),
                               rtol=2e-2, atol=1e-5)

    # bfloat16 output path (halves output HBM bytes); internal math stays f32.
    out_bf16 = jax.block_until_ready(asf(r_ij2, out_dtype=jnp.bfloat16))
    assert out_bf16.dtype == jnp.bfloat16
    np.testing.assert_allclose(np.asarray(out_bf16, dtype=np.float32),
                               np.asarray(ref2), rtol=2e-2, atol=1e-4)

    print("KERNEL_OK")
</pallas_src>

<mosaic_0001>
module attributes {stable_mosaic.version = 11 : i64} {
  func.func @_asf_kernel(%arg0: i32, %arg1: memref<6x8x128xf32, #tpu.memory_space<vmem>>, %arg2: memref<32x8x128xf32, #tpu.memory_space<vmem>>) attributes {dimension_semantics = [#tpu.dimension_semantics<parallel>], iteration_bounds = array<i64: 1>, scalar_prefetch = 0 : i64, scratch_operands = 0 : i64, tpu.core_type = #tpu.core_type<tc>, window_params = [{transform_indices = @transform_0, window_bounds = array<i64: 6, 8, 128>}, {transform_indices = @transform_1, window_bounds = array<i64: 32, 8, 128>}]} {
    %c0_i32 = arith.constant 0 : i32
    %c1_i32 = arith.constant 1 : i32
    %0 = arith.muli %c0_i32, %c1_i32 : i32
    %c0_i32_0 = arith.constant 0 : i32
    %1 = arith.addi %c0_i32_0, %0 : i32
    %c8_i32 = arith.constant 8 : i32
    %2 = arith.muli %1, %c8_i32 : i32
    %3 = tpu.assume_multiple %2, 8 : i32
    %c0 = arith.constant 0 : index
    %4 = arith.index_cast %3 : i32 to index
    %c0_1 = arith.constant 0 : index
    %5 = vector.load %arg1[%c0, %4, %c0_1] : memref<6x8x128xf32, #tpu.memory_space<vmem>>, vector<1x8x128xf32>
    %6 = vector.shape_cast %5 : vector<1x8x128xf32> to vector<8x128xf32>
    %c1 = arith.constant 1 : index
    %7 = arith.index_cast %3 : i32 to index
    %c0_2 = arith.constant 0 : index
    %8 = vector.load %arg1[%c1, %7, %c0_2] : memref<6x8x128xf32, #tpu.memory_space<vmem>>, vector<1x8x128xf32>
    %9 = vector.shape_cast %8 : vector<1x8x128xf32> to vector<8x128xf32>
    %c2 = arith.constant 2 : index
    %10 = arith.index_cast %3 : i32 to index
    %c0_3 = arith.constant 0 : index
    %11 = vector.load %arg1[%c2, %10, %c0_3] : memref<6x8x128xf32, #tpu.memory_space<vmem>>, vector<1x8x128xf32>
    %12 = vector.shape_cast %11 : vector<1x8x128xf32> to vector<8x128xf32>
    %c3 = arith.constant 3 : index
    %13 = arith.index_cast %3 : i32 to index
    %c0_4 = arith.constant 0 : index
    %14 = vector.load %arg1[%c3, %13, %c0_4] : memref<6x8x128xf32, #tpu.memory_space<vmem>>, vector<1x8x128xf32>
    %15 = vector.shape_cast %14 : vector<1x8x128xf32> to vector<8x128xf32>
    %c4 = arith.constant 4 : index
    %16 = arith.index_cast %3 : i32 to index
    %c0_5 = arith.constant 0 : index
    %17 = vector.load %arg1[%c4, %16, %c0_5] : memref<6x8x128xf32, #tpu.memory_space<vmem>>, vector<1x8x128xf32>
    %18 = vector.shape_cast %17 : vector<1x8x128xf32> to vector<8x128xf32>
    %c5 = arith.constant 5 : index
    %19 = arith.index_cast %3 : i32 to index
    %c0_6 = arith.constant 0 : index
    %20 = vector.load %arg1[%c5, %19, %c0_6] : memref<6x8x128xf32, #tpu.memory_space<vmem>>, vector<1x8x128xf32>
    %21 = vector.shape_cast %20 : vector<1x8x128xf32> to vector<8x128xf32>
    %22 = arith.mulf %6, %6 : vector<8x128xf32>
    %23 = arith.mulf %9, %9 : vector<8x128xf32>
    %24 = arith.addf %22, %23 : vector<8x128xf32>
    %25 = arith.mulf %12, %12 : vector<8x128xf32>
    %26 = arith.addf %24, %25 : vector<8x128xf32>
    %cst = arith.constant 9.99999996E-13 : f32
    %27 = vector.broadcast %cst : f32 to vector<8x128xf32>
    %28 = arith.maximumf %26, %27 : vector<8x128xf32>
    %29 = arith.mulf %15, %15 : vector<8x128xf32>
    %30 = arith.mulf %18, %18 : vector<8x128xf32>
    %31 = arith.addf %29, %30 : vector<8x128xf32>
    %32 = arith.mulf %21, %21 : vector<8x128xf32>
    %33 = arith.addf %31, %32 : vector<8x128xf32>
    %cst_7 = arith.constant 9.99999996E-13 : f32
    %34 = vector.broadcast %cst_7 : f32 to vector<8x128xf32>
    %35 = arith.maximumf %33, %34 : vector<8x128xf32>
    %36 = arith.mulf %6, %15 : vector<8x128xf32>
    %37 = arith.mulf %9, %18 : vector<8x128xf32>
    %38 = arith.addf %36, %37 : vector<8x128xf32>
    %39 = arith.mulf %12, %21 : vector<8x128xf32>
    %40 = arith.addf %38, %39 : vector<8x128xf32>
    %41 = math.rsqrt %28 : vector<8x128xf32>
    %42 = math.rsqrt %35 : vector<8x128xf32>
    %43 = arith.mulf %28, %41 : vector<8x128xf32>
    %44 = arith.mulf %35, %42 : vector<8x128xf32>
    %45 = arith.addf %43, %44 : vector<8x128xf32>
    %cst_8 = arith.constant 5.000000e-01 : f32
    %46 = vector.broadcast %cst_8 : f32 to vector<8x128xf32>
    %47 = arith.mulf %46, %45 : vector<8x128xf32>
    %cst_9 = arith.constant 5.000000e-01 : f32
    %48 = vector.broadcast %cst_9 : f32 to vector<8x128xf32>
    %49 = arith.minimumf %43, %48 : vector<8x128xf32>
    %cst_10 = arith.constant 6.28318548 : f32
    %50 = vector.broadcast %cst_10 : f32 to vector<8x128xf32>
    %51 = arith.mulf %49, %50 : vector<8x128xf32>
    %52 = math.cos %51 : vector<8x128xf32>
    %cst_11 = arith.constant 1.000000e+00 : f32
    %53 = vector.broadcast %cst_11 : f32 to vector<8x128xf32>
    %54 = arith.addf %52, %53 : vector<8x128xf32>
    %cst_12 = arith.constant 5.000000e-01 : f32
    %55 = vector.broadcast %cst_12 : f32 to vector<8x128xf32>
    %56 = arith.mulf %55, %54 : vector<8x128xf32>
    %cst_13 = arith.constant 5.000000e-01 : f32
    %57 = vector.broadcast %cst_13 : f32 to vector<8x128xf32>
    %58 = arith.minimumf %44, %57 : vector<8x128xf32>
    %cst_14 = arith.constant 6.28318548 : f32
    %59 = vector.broadcast %cst_14 : f32 to vector<8x128xf32>
    %60 = arith.mulf %58, %59 : vector<8x128xf32>
    %61 = math.cos %60 : vector<8x128xf32>
    %cst_15 = arith.constant 1.000000e+00 : f32
    %62 = vector.broadcast %cst_15 : f32 to vector<8x128xf32>
    %63 = arith.addf %61, %62 : vector<8x128xf32>
    %cst_16 = arith.constant 5.000000e-01 : f32
    %64 = vector.broadcast %cst_16 : f32 to vector<8x128xf32>
    %65 = arith.mulf %64, %63 : vector<8x128xf32>
    %cst_17 = arith.constant 2.000000e+00 : f32
    %66 = vector.broadcast %cst_17 : f32 to vector<8x128xf32>
    %67 = arith.mulf %66, %56 : vector<8x128xf32>
    %68 = arith.mulf %67, %65 : vector<8x128xf32>
    %cst_18 = arith.constant 0.949999988 : f32
    %69 = vector.broadcast %cst_18 : f32 to vector<8x128xf32>
    %70 = arith.mulf %69, %40 : vector<8x128xf32>
    %71 = arith.mulf %41, %42 : vector<8x128xf32>
    %72 = arith.mulf %70, %71 : vector<8x128xf32>
    %73 = arith.mulf %72, %72 : vector<8x128xf32>
    %cst_19 = arith.constant 1.000000e+00 : f32
    %74 = vector.broadcast %cst_19 : f32 to vector<8x128xf32>
    %75 = arith.subf %74, %73 : vector<8x128xf32>
    %cst_20 = arith.constant 0.000000e+00 : f32
    %76 = vector.broadcast %cst_20 : f32 to vector<8x128xf32>
    %77 = arith.maximumf %75, %76 : vector<8x128xf32>
    %78 = math.sqrt %77 : vector<8x128xf32>
    %cst_21 = arith.constant 0.923879504 : f32
    %79 = vector.broadcast %cst_21 : f32 to vector<8x128xf32>
    %80 = arith.mulf %72, %79 : vector<8x128xf32>
    %cst_22 = arith.constant 0.382683426 : f32
    %81 = vector.broadcast %cst_22 : f32 to vector<8x128xf32>
    %82 = arith.mulf %78, %81 : vector<8x128xf32>
    %83 = arith.addf %80, %82 : vector<8x128xf32>
    %cst_23 = arith.constant 1.000000e+00 : f32
    %84 = vector.broadcast %cst_23 : f32 to vector<8x128xf32>
    %85 = arith.addf %84, %83 : vector<8x128xf32>
    %cst_24 = arith.constant 5.000000e-01 : f32
    %86 = vector.broadcast %cst_24 : f32 to vector<8x128xf32>
    %87 = arith.mulf %86, %85 : vector<8x128xf32>
    %cst_25 = arith.constant 1.000000e-30 : f32
    %88 = vector.broadcast %cst_25 : f32 to vector<8x128xf32>
    %89 = arith.maximumf %87, %88 : vector<8x128xf32>
    %90 = math.log %89 : vector<8x128xf32>
    %cst_26 = arith.constant 1.410000e+01 : f32
    %91 = vector.broadcast %cst_26 : f32 to vector<8x128xf32>
    %92 = arith.mulf %91, %90 : vector<8x128xf32>
    %93 = math.exp %92 : vector<8x128xf32>
    %94 = arith.mulf %93, %68 : vector<8x128xf32>
    %cst_27 = arith.constant 0.382683426 : f32
    %95 = vector.broadcast %cst_27 : f32 to vector<8x128xf32>
    %96 = arith.mulf %72, %95 : vector<8x128xf32>
    %cst_28 = arith.constant 0.923879504 : f32
    %97 = vector.broadcast %cst_28 : f32 to vector<8x128xf32>
    %98 = arith.mulf %78, %97 : vector<8x128xf32>
    %99 = arith.addf %96, %98 : vector<8x128xf32>
    %cst_29 = arith.constant 1.000000e+00 : f32
    %100 = vector.broadcast %cst_29 : f32 to vector<8x128xf32>
    %101 = arith.addf %100, %99 : vector<8x128xf32>
    %cst_30 = arith.constant 5.000000e-01 : f32
    %102 = vector.broadcast %cst_30 : f32 to vector<8x128xf32>
    %103 = arith.mulf %102, %101 : vector<8x128xf32>
    %cst_31 = arith.constant 1.000000e-30 : f32
    %104 = vector.broadcast %cst_31 : f32 to vector<8x128xf32>
    %105 = arith.maximumf %103, %104 : vector<8x128xf32>
    %106 = math.log %105 : vector<8x128xf32>
    %cst_32 = arith.constant 1.410000e+01 : f32
    %107 = vector.broadcast %cst_32 : f32 to vector<8x128xf32>
    %108 = arith.mulf %107, %106 : vector<8x128xf32>
    %109 = math.exp %108 : vector<8x128xf32>
    %110 = arith.mulf %109, %68 : vector<8x128xf32>
    %cst_33 = arith.constant -0.382683426 : f32
    %111 = vector.broadcast %cst_33 : f32 to vector<8x128xf32>
    %112 = arith.mulf %72, %111 : vector<8x128xf32>
    %cst_34 = arith.constant 0.923879504 : f32
    %113 = vector.broadcast %cst_34 : f32 to vector<8x128xf32>
    %114 = arith.mulf %78, %113 : vector<8x128xf32>
    %115 = arith.addf %112, %114 : vector<8x128xf32>
    %cst_35 = arith.constant 1.000000e+00 : f32
    %116 = vector.broadcast %cst_35 : f32 to vector<8x128xf32>
    %117 = arith.addf %116, %115 : vector<8x128xf32>
    %cst_36 = arith.constant 5.000000e-01 : f32
    %118 = vector.broadcast %cst_36 : f32 to vector<8x128xf32>
    %119 = arith.mulf %118, %117 : vector<8x128xf32>
    %cst_37 = arith.constant 1.000000e-30 : f32
    %120 = vector.broadcast %cst_37 : f32 to vector<8x128xf32>
    %121 = arith.maximumf %119, %120 : vector<8x128xf32>
    %122 = math.log %121 : vector<8x128xf32>
    %cst_38 = arith.constant 1.410000e+01 : f32
    %123 = vector.broadcast %cst_38 : f32 to vector<8x128xf32>
    %124 = arith.mulf %123, %122 : vector<8x128xf32>
    %125 = math.exp %124 : vector<8x128xf32>
    %126 = arith.mulf %125, %68 : vector<8x128xf32>
    %cst_39 = arith.constant -0.923879504 : f32
    %127 = vector.broadcast %cst_39 : f32 to vector<8x128xf32>
    %128 = arith.mulf %72, %127 : vector<8x128xf32>
    %cst_40 = arith.constant 0.382683426 : f32
    %129 = vector.broadcast %cst_40 : f32 to vector<8x128xf32>
    %130 = arith.mulf %78, %129 : vector<8x128xf32>
    %131 = arith.addf %128, %130 : vector<8x128xf32>
    %cst_41 = arith.constant 1.000000e+00 : f32
    %132 = vector.broadcast %cst_41 : f32 to vector<8x128xf32>
    %133 = arith.addf %132, %131 : vector<8x128xf32>
    %cst_42 = arith.constant 5.000000e-01 : f32
    %134 = vector.broadcast %cst_42 : f32 to vector<8x128xf32>
    %135 = arith.mulf %134, %133 : vector<8x128xf32>
    %cst_43 = arith.constant 1.000000e-30 : f32
    %136 = vector.broadcast %cst_43 : f32 to vector<8x128xf32>
    %137 = arith.maximumf %135, %136 : vector<8x128xf32>
    %138 = math.log %137 : vector<8x128xf32>
    %cst_44 = arith.constant 1.410000e+01 : f32
    %139 = vector.broadcast %cst_44 : f32 to vector<8x128xf32>
    %140 = arith.mulf %139, %138 : vector<8x128xf32>
    %141 = math.exp %140 : vector<8x128xf32>
    %142 = arith.mulf %141, %68 : vector<8x128xf32>
    %cst_45 = arith.constant 5.000000e-02 : f32
    %143 = vector.broadcast %cst_45 : f32 to vector<8x128xf32>
    %144 = arith.subf %47, %143 : vector<8x128xf32>
    %cst_46 = arith.constant -1.250000e+03 : f32
    %145 = vector.broadcast %cst_46 : f32 to vector<8x128xf32>
    %146 = arith.mulf %145, %144 : vector<8x128xf32>
    %147 = arith.mulf %146, %144 : vector<8x128xf32>
    %148 = math.exp %147 : vector<8x128xf32>
    %149 = arith.mulf %94, %148 : vector<8x128xf32>
    %c0_47 = arith.constant 0 : index
    %150 = arith.index_cast %3 : i32 to index
    %c0_48 = arith.constant 0 : index
    %151 = vector.load %arg2[%c0_47, %150, %c0_48] : memref<32x8x128xf32, #tpu.memory_space<vmem>>, vector<1x8x128xf32>
    %152 = vector.shape_cast %151 : vector<1x8x128xf32> to vector<8x128xf32>
    %153 = vector.shape_cast %149 : vector<8x128xf32> to vector<1x8x128xf32>
    tpu.vector_store %arg2[%c0_47, %150, %c0_48], %153 {strides = array<i32>} : memref<32x8x128xf32, #tpu.memory_space<vmem>>, vector<1x8x128xf32>,
    %154 = arith.mulf %110, %148 : vector<8x128xf32>
    %c1_49 = arith.constant 1 : index
    %155 = arith.index_cast %3 : i32 to index
    %c0_50 = arith.constant 0 : index
    %156 = vector.load %arg2[%c1_49, %155, %c0_50] : memref<32x8x128xf32, #tpu.memory_space<vmem>>, vector<1x8x128xf32>
    %157 = vector.shape_cast %156 : vector<1x8x128xf32> to vector<8x128xf32>
    %158 = vector.shape_cast %154 : vector<8x128xf32> to vector<1x8x128xf32>
    tpu.vector_store %arg2[%c1_49, %155, %c0_50], %158 {strides = array<i32>} : memref<32x8x128xf32, #tpu.memory_space<vmem>>, vector<1x8x128xf32>,
    %159 = arith.mulf %126, %148 : vector<8x128xf32>
    %c2_51 = arith.constant 2 : index
    %160 = arith.index_cast %3 : i32 to index
    %c0_52 = arith.constant 0 : index
    %161 = vector.load %arg2[%c2_51, %160, %c0_52] : memref<32x8x128xf32, #tpu.memory_space<vmem>>, vector<1x8x128xf32>
    %162 = vector.shape_cast %161 : vector<1x8x128xf32> to vector<8x128xf32>
    %163 = vector.shape_cast %159 : vector<8x128xf32> to vector<1x8x128xf32>
    tpu.vector_store %arg2[%c2_51, %160, %c0_52], %163 {strides = array<i32>} : memref<32x8x128xf32, #tpu.memory_space<vmem>>, vector<1x8x128xf32>,
    %164 = arith.mulf %142, %148 : vector<8x128xf32>
    %c3_53 = arith.constant 3 : index
    %165 = arith.index_cast %3 : i32 to index
    %c0_54 = arith.constant 0 : index
    %166 = vector.load %arg2[%c3_53, %165, %c0_54] : memref<32x8x128xf32, #tpu.memory_space<vmem>>, vector<1x8x128xf32>
    %167 = vector.shape_cast %166 : vector<1x8x128xf32> to vector<8x128xf32>
    %168 = vector.shape_cast %164 : vector<8x128xf32> to vector<1x8x128xf32>
    tpu.vector_store %arg2[%c3_53, %165, %c0_54], %168 {strides = array<i32>} : memref<32x8x128xf32, #tpu.memory_space<vmem>>, vector<1x8x128xf32>,
    %cst_55 = arith.constant 1.062500e-01 : f32
    %169 = vector.broadcast %cst_55 : f32 to vector<8x128xf32>
    %170 = arith.subf %47, %169 : vector<8x128xf32>
    %cst_56 = arith.constant -1.250000e+03 : f32
    %171 = vector.broadcast %cst_56 : f32 to vector<8x128xf32>
    %172 = arith.mulf %171, %170 : vector<8x128xf32>
    %173 = arith.mulf %172, %170 : vector<8x128xf32>
    %174 = math.exp %173 : vector<8x128xf32>
    %175 = arith.mulf %94, %174 : vector<8x128xf32>
    %c4_57 = arith.constant 4 : index
    %176 = arith.index_cast %3 : i32 to index
    %c0_58 = arith.constant 0 : index
    %177 = vector.load %arg2[%c4_57, %176, %c0_58] : memref<32x8x128xf32, #tpu.memory_space<vmem>>, vector<1x8x128xf32>
    %178 = vector.shape_cast %177 : vector<1x8x128xf32> to vector<8x128xf32>
    %179 = vector.shape_cast %175 : vector<8x128xf32> to vector<1x8x128xf32>
    tpu.vector_store %arg2[%c4_57, %176, %c0_58], %179 {strides = array<i32>} : memref<32x8x128xf32, #tpu.memory_space<vmem>>, vector<1x8x128xf32>,
    %180 = arith.mulf %110, %174 : vector<8x128xf32>
    %c5_59 = arith.constant 5 : index
    %181 = arith.index_cast %3 : i32 to index
    %c0_60 = arith.constant 0 : index
    %182 = vector.load %arg2[%c5_59, %181, %c0_60] : memref<32x8x128xf32, #tpu.memory_space<vmem>>, vector<1x8x128xf32>
    %183 = vector.shape_cast %182 : vector<1x8x128xf32> to vector<8x128xf32>
    %184 = vector.shape_cast %180 : vector<8x128xf32> to vector<1x8x128xf32>
    tpu.vector_store %arg2[%c5_59, %181, %c0_60], %184 {strides = array<i32>} : memref<32x8x128xf32, #tpu.memory_space<vmem>>, vector<1x8x128xf32>,
    %185 = arith.mulf %126, %174 : vector<8x128xf32>
    %c6 = arith.constant 6 : index
    %186 = arith.index_cast %3 : i32 to index
    %c0_61 = arith.constant 0 : index
    %187 = vector.load %arg2[%c6, %186, %c0_61] : memref<32x8x128xf32, #tpu.memory_space<vmem>>, vector<1x8x128xf32>
    %188 = vector.shape_cast %187 : vector<1x8x128xf32> to vector<8x128xf32>
    %189 = vector.shape_cast %185 : vector<8x128xf32> to vector<1x8x128xf32>
    tpu.vector_store %arg2[%c6, %186, %c0_61], %189 {strides = array<i32>} : memref<32x8x128xf32, #tpu.memory_space<vmem>>, vector<1x8x128xf32>,
    %190 = arith.mulf %142, %174 : vector<8x128xf32>
    %c7 = arith.constant 7 : index
    %191 = arith.index_cast %3 : i32 to index
    %c0_62 = arith.constant 0 : index
    %192 = vector.load %arg2[%c7, %191, %c0_62] : memref<32x8x128xf32, #tpu.memory_space<vmem>>, vector<1x8x128xf32>
    %193 = vector.shape_cast %192 : vector<1x8x128xf32> to vector<8x128xf32>
    %194 = vector.shape_cast %190 : vector<8x128xf32> to vector<1x8x128xf32>
    tpu.vector_store %arg2[%c7, %191, %c0_62], %194 {strides = array<i32>} : memref<32x8x128xf32, #tpu.memory_space<vmem>>, vector<1x8x128xf32>,
    %cst_63 = arith.constant 1.625000e-01 : f32
    %195 = vector.broadcast %cst_63 : f32 to vector<8x128xf32>
    %196 = arith.subf %47, %195 : vector<8x128xf32>
    %cst_64 = arith.constant -1.250000e+03 : f32
    %197 = vector.broadcast %cst_64 : f32 to vector<8x128xf32>
    %198 = arith.mulf %197, %196 : vector<8x128xf32>
    %199 = arith.mulf %198, %196 : vector<8x128xf32>
    %200 = math.exp %199 : vector<8x128xf32>
    %201 = arith.mulf %94, %200 : vector<8x128xf32>
    %c8 = arith.constant 8 : index
    %202 = arith.index_cast %3 : i32 to index
    %c0_65 = arith.constant 0 : index
    %203 = vector.load %arg2[%c8, %202, %c0_65] : memref<32x8x128xf32, #tpu.memory_space<vmem>>, vector<1x8x128xf32>
    %204 = vector.shape_cast %203 : vector<1x8x128xf32> to vector<8x128xf32>
    %205 = vector.shape_cast %201 : vector<8x128xf32> to vector<1x8x128xf32>
    tpu.vector_store %arg2[%c8, %202, %c0_65], %205 {strides = array<i32>} : memref<32x8x128xf32, #tpu.memory_space<vmem>>, vector<1x8x128xf32>,
    %206 = arith.mulf %110, %200 : vector<8x128xf32>
    %c9 = arith.constant 9 : index
    %207 = arith.index_cast %3 : i32 to index
    %c0_66 = arith.constant 0 : index
    %208 = vector.load %arg2[%c9, %207, %c0_66] : memref<32x8x128xf32, #tpu.memory_space<vmem>>, vector<1x8x128xf32>
    %209 = vector.shape_cast %208 : vector<1x8x128xf32> to vector<8x128xf32>
    %210 = vector.shape_cast %206 : vector<8x128xf32> to vector<1x8x128xf32>
    tpu.vector_store %arg2[%c9, %207, %c0_66], %210 {strides = array<i32>} : memref<32x8x128xf32, #tpu.memory_space<vmem>>, vector<1x8x128xf32>,
    %211 = arith.mulf %126, %200 : vector<8x128xf32>
    %c10 = arith.constant 10 : index
    %212 = arith.index_cast %3 : i32 to index
    %c0_67 = arith.constant 0 : index
    %213 = vector.load %arg2[%c10, %212, %c0_67] : memref<32x8x128xf32, #tpu.memory_space<vmem>>, vector<1x8x128xf32>
    %214 = vector.shape_cast %213 : vector<1x8x128xf32> to vector<8x128xf32>
    %215 = vector.shape_cast %211 : vector<8x128xf32> to vector<1x8x128xf32>
    tpu.vector_store %arg2[%c10, %212, %c0_67], %215 {strides = array<i32>} : memref<32x8x128xf32, #tpu.memory_space<vmem>>, vector<1x8x128xf32>,
    %216 = arith.mulf %142, %200 : vector<8x128xf32>
    %c11 = arith.constant 11 : index
    %217 = arith.index_cast %3 : i32 to index
    %c0_68 = arith.constant 0 : index
    %218 = vector.load %arg2[%c11, %217, %c0_68] : memref<32x8x128xf32, #tpu.memory_space<vmem>>, vector<1x8x128xf32>
    %219 = vector.shape_cast %218 : vector<1x8x128xf32> to vector<8x128xf32>
    %220 = vector.shape_cast %216 : vector<8x128xf32> to vector<1x8x128xf32>
    tpu.vector_store %arg2[%c11, %217, %c0_68], %220 {strides = array<i32>} : memref<32x8x128xf32, #tpu.memory_space<vmem>>, vector<1x8x128xf32>,
    %cst_69 = arith.constant 2.187500e-01 : f32
    %221 = vector.broadcast %cst_69 : f32 to vector<8x128xf32>
    %222 = arith.subf %47, %221 : vector<8x128xf32>
    %cst_70 = arith.constant -1.250000e+03 : f32
    %223 = vector.broadcast %cst_70 : f32 to vector<8x128xf32>
    %224 = arith.mulf %223, %222 : vector<8x128xf32>
    %225 = arith.mulf %224, %222 : vector<8x128xf32>
    %226 = math.exp %225 : vector<8x128xf32>
    %227 = arith.mulf %94, %226 : vector<8x128xf32>
    %c12 = arith.constant 12 : index
    %228 = arith.index_cast %3 : i32 to index
    %c0_71 = arith.constant 0 : index
    %229 = vector.load %arg2[%c12, %228, %c0_71] : memref<32x8x128xf32, #tpu.memory_space<vmem>>, vector<1x8x128xf32>
    %230 = vector.shape_cast %229 : vector<1x8x128xf32> to vector<8x128xf32>
    %231 = vector.shape_cast %227 : vector<8x128xf32> to vector<1x8x128xf32>
    tpu.vector_store %arg2[%c12, %228, %c0_71], %231 {strides = array<i32>} : memref<32x8x128xf32, #tpu.memory_space<vmem>>, vector<1x8x128xf32>,
    %232 = arith.mulf %110, %226 : vector<8x128xf32>
    %c13 = arith.constant 13 : index
    %233 = arith.index_cast %3 : i32 to index
    %c0_72 = arith.constant 0 : index
    %234 = vector.load %arg2[%c13, %233, %c0_72] : memref<32x8x128xf32, #tpu.memory_space<vmem>>, vector<1x8x128xf32>
    %235 = vector.shape_cast %234 : vector<1x8x128xf32> to vector<8x128xf32>
    %236 = vector.shape_cast %232 : vector<8x128xf32> to vector<1x8x128xf32>
    tpu.vector_store %arg2[%c13, %233, %c0_72], %236 {strides = array<i32>} : memref<32x8x128xf32, #tpu.memory_space<vmem>>, vector<1x8x128xf32>,
    %237 = arith.mulf %126, %226 : vector<8x128xf32>
    %c14 = arith.constant 14 : index
    %238 = arith.index_cast %3 : i32 to index
    %c0_73 = arith.constant 0 : index
    %239 = vector.load %arg2[%c14, %238, %c0_73] : memref<32x8x128xf32, #tpu.memory_space<vmem>>, vector<1x8x128xf32>
    %240 = vector.shape_cast %239 : vector<1x8x128xf32> to vector<8x128xf32>
    %241 = vector.shape_cast %237 : vector<8x128xf32> to vector<1x8x128xf32>
    tpu.vector_store %arg2[%c14, %238, %c0_73], %241 {strides = array<i32>} : memref<32x8x128xf32, #tpu.memory_space<vmem>>, vector<1x8x128xf32>,
    %242 = arith.mulf %142, %226 : vector<8x128xf32>
    %c15 = arith.constant 15 : index
    %243 = arith.index_cast %3 : i32 to index
    %c0_74 = arith.constant 0 : index
    %244 = vector.load %arg2[%c15, %243, %c0_74] : memref<32x8x128xf32, #tpu.memory_space<vmem>>, vector<1x8x128xf32>
    %245 = vector.shape_cast %244 : vector<1x8x128xf32> to vector<8x128xf32>
    %246 = vector.shape_cast %242 : vector<8x128xf32> to vector<1x8x128xf32>
    tpu.vector_store %arg2[%c15, %243, %c0_74], %246 {strides = array<i32>} : memref<32x8x128xf32, #tpu.memory_space<vmem>>, vector<1x8x128xf32>,
    %cst_75 = arith.constant 2.750000e-01 : f32
    %247 = vector.broadcast %cst_75 : f32 to vector<8x128xf32>
    %248 = arith.subf %47, %247 : vector<8x128xf32>
    %cst_76 = arith.constant -1.250000e+03 : f32
    %249 = vector.broadcast %cst_76 : f32 to vector<8x128xf32>
    %250 = arith.mulf %249, %248 : vector<8x128xf32>
    %251 = arith.mulf %250, %248 : vector<8x128xf32>
    %252 = math.exp %251 : vector<8x128xf32>
    %253 = arith.mulf %94, %252 : vector<8x128xf32>
    %c16 = arith.constant 16 : index
    %254 = arith.index_cast %3 : i32 to index
    %c0_77 = arith.constant 0 : index
    %255 = vector.load %arg2[%c16, %254, %c0_77] : memref<32x8x128xf32, #tpu.memory_space<vmem>>, vector<1x8x128xf32>
    %256 = vector.shape_cast %255 : vector<1x8x128xf32> to vector<8x128xf32>
    %257 = vector.shape_cast %253 : vector<8x128xf32> to vector<1x8x128xf32>
    tpu.vector_store %arg2[%c16, %254, %c0_77], %257 {strides = array<i32>} : memref<32x8x128xf32, #tpu.memory_space<vmem>>, vector<1x8x128xf32>,
    %258 = arith.mulf %110, %252 : vector<8x128xf32>
    %c17 = arith.constant 17 : index
    %259 = arith.index_cast %3 : i32 to index
    %c0_78 = arith.constant 0 : index
    %260 = vector.load %arg2[%c17, %259, %c0_78] : memref<32x8x128xf32, #tpu.memory_space<vmem>>, vector<1x8x128xf32>
    %261 = vector.shape_cast %260 : vector<1x8x128xf32> to vector<8x128xf32>
    %262 = vector.shape_cast %258 : vector<8x128xf32> to vector<1x8x128xf32>
    tpu.vector_store %arg2[%c17, %259, %c0_78], %262 {strides = array<i32>} : memref<32x8x128xf32, #tpu.memory_space<vmem>>, vector<1x8x128xf32>,
    %263 = arith.mulf %126, %252 : vector<8x128xf32>
    %c18 = arith.constant 18 : index
    %264 = arith.index_cast %3 : i32 to index
    %c0_79 = arith.constant 0 : index
    %265 = vector.load %arg2[%c18, %264, %c0_79] : memref<32x8x128xf32, #tpu.memory_space<vmem>>, vector<1x8x128xf32>
    %266 = vector.shape_cast %265 : vector<1x8x128xf32> to vector<8x128xf32>
    %267 = vector.shape_cast %263 : vector<8x128xf32> to vector<1x8x128xf32>
    tpu.vector_store %arg2[%c18, %264, %c0_79], %267 {strides = array<i32>} : memref<32x8x128xf32, #tpu.memory_space<vmem>>, vector<1x8x128xf32>,
    %268 = arith.mulf %142, %252 : vector<8x128xf32>
    %c19 = arith.constant 19 : index
    %269 = arith.index_cast %3 : i32 to index
    %c0_80 = arith.constant 0 : index
    %270 = vector.load %arg2[%c19, %269, %c0_80] : memref<32x8x128xf32, #tpu.memory_space<vmem>>, vector<1x8x128xf32>
    %271 = vector.shape_cast %270 : vector<1x8x128xf32> to vector<8x128xf32>
    %272 = vector.shape_cast %268 : vector<8x128xf32> to vector<1x8x128xf32>
    tpu.vector_store %arg2[%c19, %269, %c0_80], %272 {strides = array<i32>} : memref<32x8x128xf32, #tpu.memory_space<vmem>>, vector<1x8x128xf32>,
    %cst_81 = arith.constant 3.312500e-01 : f32
    %273 = vector.broadcast %cst_81 : f32 to vector<8x128xf32>
    %274 = arith.subf %47, %273 : vector<8x128xf32>
    %cst_82 = arith.constant -1.250000e+03 : f32
    %275 = vector.broadcast %cst_82 : f32 to vector<8x128xf32>
    %276 = arith.mulf %275, %274 : vector<8x128xf32>
    %277 = arith.mulf %276, %274 : vector<8x128xf32>
    %278 = math.exp %277 : vector<8x128xf32>
    %279 = arith.mulf %94, %278 : vector<8x128xf32>
    %c20 = arith.constant 20 : index
    %280 = arith.index_cast %3 : i32 to index
    %c0_83 = arith.constant 0 : index
    %281 = vector.load %arg2[%c20, %280, %c0_83] : memref<32x8x128xf32, #tpu.memory_space<vmem>>, vector<1x8x128xf32>
    %282 = vector.shape_cast %281 : vector<1x8x128xf32> to vector<8x128xf32>
    %283 = vector.shape_cast %279 : vector<8x128xf32> to vector<1x8x128xf32>
    tpu.vector_store %arg2[%c20, %280, %c0_83], %283 {strides = array<i32>} : memref<32x8x128xf32, #tpu.memory_space<vmem>>, vector<1x8x128xf32>,
    %284 = arith.mulf %110, %278 : vector<8x128xf32>
    %c21 = arith.constant 21 : index
    %285 = arith.index_cast %3 : i32 to index
    %c0_84 = arith.constant 0 : index
    %286 = vector.load %arg2[%c21, %285, %c0_84] : memref<32x8x128xf32, #tpu.memory_space<vmem>>, vector<1x8x128xf32>
    %287 = vector.shape_cast %286 : vector<1x8x128xf32> to vector<8x128xf32>
    %288 = vector.shape_cast %284 : vector<8x128xf32> to vector<1x8x128xf32>
    tpu.vector_store %arg2[%c21, %285, %c0_84], %288 {strides = array<i32>} : memref<32x8x128xf32, #tpu.memory_space<vmem>>, vector<1x8x128xf32>,
    %289 = arith.mulf %126, %278 : vector<8x128xf32>
    %c22 = arith.constant 22 : index
    %290 = arith.index_cast %3 : i32 to index
    %c0_85 = arith.constant 0 : index
    %291 = vector.load %arg2[%c22, %290, %c0_85] : memref<32x8x128xf32, #tpu.memory_space<vmem>>, vector<1x8x128xf32>
    %292 = vector.shape_cast %291 : vector<1x8x128xf32> to vector<8x128xf32>
    %293 = vector.shape_cast %289 : vector<8x128xf32> to vector<1x8x128xf32>
    tpu.vector_store %arg2[%c22, %290, %c0_85], %293 {strides = array<i32>} : memref<32x8x128xf32, #tpu.memory_space<vmem>>, vector<1x8x128xf32>,
    %294 = arith.mulf %142, %278 : vector<8x128xf32>
    %c23 = arith.constant 23 : index
    %295 = arith.index_cast %3 : i32 to index
    %c0_86 = arith.constant 0 : index
    %296 = vector.load %arg2[%c23, %295, %c0_86] : memref<32x8x128xf32, #tpu.memory_space<vmem>>, vector<1x8x128xf32>
    %297 = vector.shape_cast %296 : vector<1x8x128xf32> to vector<8x128xf32>
    %298 = vector.shape_cast %294 : vector<8x128xf32> to vector<1x8x128xf32>
    tpu.vector_store %arg2[%c23, %295, %c0_86], %298 {strides = array<i32>} : memref<32x8x128xf32, #tpu.memory_space<vmem>>, vector<1x8x128xf32>,
    %cst_87 = arith.constant 3.875000e-01 : f32
    %299 = vector.broadcast %cst_87 : f32 to vector<8x128xf32>
    %300 = arith.subf %47, %299 : vector<8x128xf32>
    %cst_88 = arith.constant -1.250000e+03 : f32
    %301 = vector.broadcast %cst_88 : f32 to vector<8x128xf32>
    %302 = arith.mulf %301, %300 : vector<8x128xf32>
    %303 = arith.mulf %302, %300 : vector<8x128xf32>
    %304 = math.exp %303 : vector<8x128xf32>
    %305 = arith.mulf %94, %304 : vector<8x128xf32>
    %c24 = arith.constant 24 : index
    %306 = arith.index_cast %3 : i32 to index
    %c0_89 = arith.constant 0 : index
    %307 = vector.load %arg2[%c24, %306, %c0_89] : memref<32x8x128xf32, #tpu.memory_space<vmem>>, vector<1x8x128xf32>
    %308 = vector.shape_cast %307 : vector<1x8x128xf32> to vector<8x128xf32>
    %309 = vector.shape_cast %305 : vector<8x128xf32> to vector<1x8x128xf32>
    tpu.vector_store %arg2[%c24, %306, %c0_89], %309 {strides = array<i32>} : memref<32x8x128xf32, #tpu.memory_space<vmem>>, vector<1x8x128xf32>,
    %310 = arith.mulf %110, %304 : vector<8x128xf32>
    %c25 = arith.constant 25 : index
    %311 = arith.index_cast %3 : i32 to index
    %c0_90 = arith.constant 0 : index
    %312 = vector.load %arg2[%c25, %311, %c0_90] : memref<32x8x128xf32, #tpu.memory_space<vmem>>, vector<1x8x128xf32>
    %313 = vector.shape_cast %312 : vector<1x8x128xf32> to vector<8x128xf32>
    %314 = vector.shape_cast %310 : vector<8x128xf32> to vector<1x8x128xf32>
    tpu.vector_store %arg2[%c25, %311, %c0_90], %314 {strides = array<i32>} : memref<32x8x128xf32, #tpu.memory_space<vmem>>, vector<1x8x128xf32>,
    %315 = arith.mulf %126, %304 : vector<8x128xf32>
    %c26 = arith.constant 26 : index
    %316 = arith.index_cast %3 : i32 to index
    %c0_91 = arith.constant 0 : index
    %317 = vector.load %arg2[%c26, %316, %c0_91] : memref<32x8x128xf32, #tpu.memory_space<vmem>>, vector<1x8x128xf32>
    %318 = vector.shape_cast %317 : vector<1x8x128xf32> to vector<8x128xf32>
    %319 = vector.shape_cast %315 : vector<8x128xf32> to vector<1x8x128xf32>
    tpu.vector_store %arg2[%c26, %316, %c0_91], %319 {strides = array<i32>} : memref<32x8x128xf32, #tpu.memory_space<vmem>>, vector<1x8x128xf32>,
    %320 = arith.mulf %142, %304 : vector<8x128xf32>
    %c27 = arith.constant 27 : index
    %321 = arith.index_cast %3 : i32 to index
    %c0_92 = arith.constant 0 : index
    %322 = vector.load %arg2[%c27, %321, %c0_92] : memref<32x8x128xf32, #tpu.memory_space<vmem>>, vector<1x8x128xf32>
    %323 = vector.shape_cast %322 : vector<1x8x128xf32> to vector<8x128xf32>
    %324 = vector.shape_cast %320 : vector<8x128xf32> to vector<1x8x128xf32>
    tpu.vector_store %arg2[%c27, %321, %c0_92], %324 {strides = array<i32>} : memref<32x8x128xf32, #tpu.memory_space<vmem>>, vector<1x8x128xf32>,
    %cst_93 = arith.constant 4.437500e-01 : f32
    %325 = vector.broadcast %cst_93 : f32 to vector<8x128xf32>
    %326 = arith.subf %47, %325 : vector<8x128xf32>
    %cst_94 = arith.constant -1.250000e+03 : f32
    %327 = vector.broadcast %cst_94 : f32 to vector<8x128xf32>
    %328 = arith.mulf %327, %326 : vector<8x128xf32>
    %329 = arith.mulf %328, %326 : vector<8x128xf32>
    %330 = math.exp %329 : vector<8x128xf32>
    %331 = arith.mulf %94, %330 : vector<8x128xf32>
    %c28 = arith.constant 28 : index
    %332 = arith.index_cast %3 : i32 to index
    %c0_95 = arith.constant 0 : index
    %333 = vector.load %arg2[%c28, %332, %c0_95] : memref<32x8x128xf32, #tpu.memory_space<vmem>>, vector<1x8x128xf32>
    %334 = vector.shape_cast %333 : vector<1x8x128xf32> to vector<8x128xf32>
    %335 = vector.shape_cast %331 : vector<8x128xf32> to vector<1x8x128xf32>
    tpu.vector_store %arg2[%c28, %332, %c0_95], %335 {strides = array<i32>} : memref<32x8x128xf32, #tpu.memory_space<vmem>>, vector<1x8x128xf32>,
    %336 = arith.mulf %110, %330 : vector<8x128xf32>
    %c29 = arith.constant 29 : index
    %337 = arith.index_cast %3 : i32 to index
    %c0_96 = arith.constant 0 : index
    %338 = vector.load %arg2[%c29, %337, %c0_96] : memref<32x8x128xf32, #tpu.memory_space<vmem>>, vector<1x8x128xf32>
    %339 = vector.shape_cast %338 : vector<1x8x128xf32> to vector<8x128xf32>
    %340 = vector.shape_cast %336 : vector<8x128xf32> to vector<1x8x128xf32>
    tpu.vector_store %arg2[%c29, %337, %c0_96], %340 {strides = array<i32>} : memref<32x8x128xf32, #tpu.memory_space<vmem>>, vector<1x8x128xf32>,
    %341 = arith.mulf %126, %330 : vector<8x128xf32>
    %c30 = arith.constant 30 : index
    %342 = arith.index_cast %3 : i32 to index
    %c0_97 = arith.constant 0 : index
    %343 = vector.load %arg2[%c30, %342, %c0_97] : memref<32x8x128xf32, #tpu.memory_space<vmem>>, vector<1x8x128xf32>
    %344 = vector.shape_cast %343 : vector<1x8x128xf32> to vector<8x128xf32>
    %345 = vector.shape_cast %341 : vector<8x128xf32> to vector<1x8x128xf32>
    tpu.vector_store %arg2[%c30, %342, %c0_97], %345 {strides = array<i32>} : memref<32x8x128xf32, #tpu.memory_space<vmem>>, vector<1x8x128xf32>,
    %346 = arith.mulf %142, %330 : vector<8x128xf32>
    %c31 = arith.constant 31 : index
    %347 = arith.index_cast %3 : i32 to index
    %c0_98 = arith.constant 0 : index
    %348 = vector.load %arg2[%c31, %347, %c0_98] : memref<32x8x128xf32, #tpu.memory_space<vmem>>, vector<1x8x128xf32>
    %349 = vector.shape_cast %348 : vector<1x8x128xf32> to vector<8x128xf32>
    %350 = vector.shape_cast %346 : vector<8x128xf32> to vector<1x8x128xf32>
    tpu.vector_store %arg2[%c31, %347, %c0_98], %350 {strides = array<i32>} : memref<32x8x128xf32, #tpu.memory_space<vmem>>, vector<1x8x128xf32>,
    %c1_i32_99 = arith.constant 1 : i32
    return
  }
  func.func @transform_0(%arg0: i32) -> (i32, i32, i32) {
    %c0_i32 = arith.constant 0 : i32
    %c0_i32_0 = arith.constant 0 : i32
    %c0_i32_1 = arith.constant 0 : i32
    return %c0_i32, %arg0, %c0_i32_0 : i32, i32, i32
  }
  func.func @transform_1(%arg0: i32) -> (i32, i32, i32) {
    %c0_i32 = arith.constant 0 : i32
    %c0_i32_0 = arith.constant 0 : i32
    %c0_i32_1 = arith.constant 0 : i32
    return %c0_i32, %arg0, %c0_i32_0 : i32, i32, i32
  }
}

</mosaic_0001>

<llo_original>
// kernel: tpu_custom_call.1
$region0: #{tpu_custom_call.1}
  #allocation0 [shape = 'u32[]', space=smem, size = 0x4, offset = 0x4, fixed_abs, tag = 'smem constant byte address 0x4 - core index']
  #allocation1 [shape = 'u32[144,128]{1,0:T(1,128)}', space=vmem, size = 0x12000, scoped, tag = 'internal scratch']
  %s0 = inlined_call_operand.hbm [shape: f32[6,8,128], index: 0, kind: input, shape index: {}]
  %s1 = inlined_call_operand.hbm [shape: f32[32,8,128], index: 1, kind: output, shape index: {}]
  %s2 = sld [smem:[#allocation0]]
  $region18: #{tpu_custom_call.1} parent=0
    _
  %s4 = ssub.s32 1, %s2
  %s5 = scalar_select 0, %s4, %s2
  $region1: #{tpu_custom_call.1} parent=0
    #allocation2 [shape = 'u8[24576]{0}', space=vmem, size = 0x6000, scoped, tag = 'input window, operand 0, single buffered']
    #allocation3 [shape = 's32[1]{0}', space=sflag, size = 0x4, scoped, tag = 'scoped memory for tpu_custom_call.1']
    #allocation4 [shape = 's32[1]{0}', space=sflag, size = 0x4, scoped, tag = 'scoped memory for tpu_custom_call.1']
    #allocation5 [shape = 'u8[131072]{0}', space=vmem, size = 0x20000, scoped, tag = 'output window, operand 0, single buffered']
    %6 = vsyncpa [#allocation3], 0
    %7 = vsyncpa [#allocation4], 0
    // Predicated region
    $region2: #{tpu_custom_call.1} parent=1 // pred_check
      _
    $region3: #{tpu_custom_call.1} parent=1 // pred_check_branch
      %9 = sbr.rel (0) target = $region5
    $region4: #{tpu_custom_call.1} parent=1 // pred_region
      %s11 = ssub.s32 768, 768
      %12 = vsyncadd [#allocation3], %s11
      %s13 = sshll.u32 [#allocation2], 4
      %s14 = int_to_ptr.vmem [resolvable:$true] %s13
      %19 = dma.hbm_to_vmem [thread:$0]  %s0, 768, %s14, [#allocation3], 128, 128, 8
    $region5: #{tpu_custom_call.1} parent=1 // pred_fallthru
      _
    // Predicated region
    $region6: #{tpu_custom_call.1} parent=1 // pred_check
      _
    $region7: #{tpu_custom_call.1} parent=1 // pred_check_branch
      %21 = sbr.rel (0) target = $region9
    $region8: #{tpu_custom_call.1} parent=1 // pred_region
      %22 = dma.done [#allocation3], 768
    $region9: #{tpu_custom_call.1} parent=1 // pred_fallthru
      _
    %v23 = vld [vmem:[#allocation2] sm:$0xff]
    %s24 = sadd.s32 0, 8
    %s25 = scalar_lea.vmem [#allocation2], %s24
    %v26 = vld [vmem:[%s25] sm:$0xff]
    %s27 = sadd.s32 0, 16
    %s28 = scalar_lea.vmem [#allocation2], %s27
    %v29 = vld [vmem:[%s28] sm:$0xff]
    %s30 = sadd.s32 0, 24
    %s31 = scalar_lea.vmem [#allocation2], %s30
    %v32 = vld [vmem:[%s31] sm:$0xff]
    %s33 = sadd.s32 0, 32
    %s34 = scalar_lea.vmem [#allocation2], %s33
    %v35 = vld [vmem:[%s34] sm:$0xff]
    %s36 = sadd.s32 0, 40
    %s37 = scalar_lea.vmem [#allocation2], %s36
    %v38 = vld [vmem:[%s37] sm:$0xff]
    %v39 = vmul.f32 %v23, %v23
    %v40 = vmul.f32 %v26, %v26
    %v41 = vadd.f32 %v39, %v40
    %v42 = vmul.f32 %v29, %v29
    %v43 = vadd.f32 %v41, %v42
    %v44 = vmax.f32 %v43, 1e-12
    %v45 = vmul.f32 %v32, %v32
    %v46 = vmul.f32 %v35, %v35
    %v47 = vadd.f32 %v45, %v46
    %v48 = vmul.f32 %v38, %v38
    %v49 = vadd.f32 %v47, %v48
    %v50 = vmax.f32 %v49, 1e-12
    %v51 = vmul.f32 %v23, %v32
    %v52 = vmul.f32 %v26, %v35
    %v53 = vadd.f32 %v51, %v52
    %v54 = vmul.f32 %v29, %v38
    %v55 = vadd.f32 %v53, %v54
    %v56 = vrsqrt.pop %v44
    %v57 = vrsqrt.pop %v50
    %v58 = vmul.f32 %v44, %v56
    %v59 = vmul.f32 %v50, %v57
    %v60 = vadd.f32 %v58, %v59
    %v61 = vmul.f32 %v60, 0.5
    %v62 = vmin.f32 %v58, 0.5
    %v63 = vmul.f32 %v62, 6.2831855
    %v64 = vand.u32 2147483647, %v63
    %vm65 = vcmp.le.f32.partialorder %v64, 0.7853982
    %vm66 = vcmp.lt.s32.totalorder %v63, 0
    %v67 = vand.u32 %v63, 2139095040
    %v68 = vshrl.u32 %v67, 23
    %v69 = vsub.s32 %v68, 127
    %v70 = vand.u32 2147483647, %v63
    %v71 = vand.u32 %v70, 8388607
    %v72 = vor.u32 %v71, 8388608
    %v73 = vsub.s32 0, %v72
    %v74 = vadd.s32 %v69, 1
    %vm75 = vcmp.gt.s32.totalorder %v74, 0
    %v76 = vsel %vm75, %v74, 0
    %v77 = vshrl.u32 %v76, 5
    %v78 = vand.u32 %v76, 31
    %v79 = vsub.s32 32, %v78
    %v80 = vshrl.u32 683565275, %v79
    %v81 = vshll.u32 683565275, %v78
    %v82 = vshrl.u32 2475754826, %v79
    %v83 = vor.u32 %v81, %v82
    %v84 = vshll.u32 2475754826, %v78
    %v85 = vshrl.u32 2131351028, %v79
    %v86 = vor.u32 %v84, %v85
    %v87 = vshll.u32 2131351028, %v78
    %v88 = vshrl.u32 2102212464, %v79
    %v89 = vor.u32 %v87, %v88
    %v90 = vshll.u32 2102212464, %v78
    %v91 = vshrl.u32 920167782, %v79
    %v92 = vor.u32 %v90, %v91
    %v93 = vshll.u32 920167782, %v78
    %v94 = vshrl.u32 1326507024, %v79
    %v95 = vor.u32 %v93, %v94
    %vm96 = vcmp.lt.s32.totalorder %v77, 1
    %vm97 = vcmp.lt.s32.totalorder %v77, 2
    %vm98 = vcmp.lt.s32.totalorder %v77, 3
    %vm99 = vcmp.lt.s32.totalorder %v77, 4
    %v100 = vsel %vm96, %v80, %v83
    %v101 = vsel %vm99, %v89, 2102212464
    %v102 = vsel %vm98, %v86, %v101
    %v103 = vsel %vm97, %v100, %v102
    %v104 = vsel %vm96, %v83, %v86
    %v105 = vsel %vm99, %v92, 920167782
    %v106 = vsel %vm98, %v89, %v105
    %v107 = vsel %vm97, %v104, %v106
    %v108 = vsel %vm96, %v86, %v89
    %v109 = vsel %vm99, %v95, 1326507024
    %v110 = vsel %vm98, %v92, %v109
    %v111 = vsel %vm97, %v108, %v110
    %v112 = vshll.u32 %v72, 8
    %v113 = vmul.u32.u64.compose %v112, %v111
    %v114 = vextract.low.u32 %v113
    %v115 = vextract.high.u32 %v113
    %v116 = vmul.u32.u64.compose %v112, %v107
    %v117 = vextract.low.u32 %v116
    %v118 = vextract.high.u32 %v116
    %v119 = vmul.u32 %v112, %v103
    %v120 = vadd.s32 %v115, %v117
    %vm121 = vc.u32 %v115, %v117
    %v122 = vadd.s32 %v118, 1
    %v123 = vsel %vm121, %v122, %v118
    %v124 = vadd.s32 %v119, %v123
    %v125 = vadd.s32 %v124, 536870912
    %v126 = vshrl.u32 %v125, 30
    %v127 = vshll.u32 %v126, 30
    %v128 = vsub.s32 %v124, %v127
    %vm129 = vcmp.lt.s32.totalorder %v128, 0
    %v130 = vsub.s32 0, %v128
    %v131 = vsel %vm129, %v130, %v128
    %v132 = vclz %v131
    %v133 = vsub.s32 %v132, 2
    %vm134 = vcmp.gt.s32.totalorder 0, %v133
    %v135 = vsel %vm134, 0, %v133
    %v136 = vsub.s32 32, %v135
    %v137 = vshll.u32 %v128, %v135
    %v138 = vshrl.u32 %v120, %v136
    %v139 = vor.u32 %v137, %v138
    %v140 = vsub.s32 4294967266, %v135
    %v141 = vadd.s32 %v140, 127
    %v142 = vshll.u32 %v141, 23
    %v143 = vor.u32 4788187, %v142
    %v144 = vand.u32 2147483647, %v143
    %v146 = vcvt.s32.f32 %v139
    %v147 = vmul.f32 %v146, %v144
    %v148 = vxor.u32 %v147, 2147483648
    %v149 = vsel %vm66, %v148, %v147
    %v150 = vsub.s32 4, %v126
    %v151 = vsel %vm66, %v150, %v126
    %v152 = vsel %vm65, %v63, %v149
    %v153 = vsel %vm65, 0, %v151
    %v154 = vcosq.f32.pop %v152
    %v155 = vsinq.f32.pop %v152
    %vm156 = vweird.f32 %v63
    %v157 = vand.u32 %v153, 3
    %vm158 = vcmp.lt.s32.totalorder %v157, 2
    %vm159 = vcmp.eq.s32.totalorder %v157, 0
    %v160 = vxor.u32 %v155, 2147483648
    %v161 = vsel %vm159, %v154, %v160
    %vm162 = vcmp.eq.s32.totalorder %v157, 2
    %v163 = vxor.u32 %v154, 2147483648
    %v164 = vsel %vm162, %v163, %v155
    %v165 = vsel %vm158, %v161, %v164
    %v166 = vsel %vm156, nan, %v165
    %v167 = vadd.f32 %v166, 1.0
    %v168 = vmul.f32 %v167, 0.5
    %v169 = vmin.f32 %v59, 0.5
    %v170 = vmul.f32 %v169, 6.2831855
    %v171 = vand.u32 2147483647, %v170
    %vm172 = vcmp.le.f32.partialorder %v171, 0.7853982
    %vm173 = vcmp.lt.s32.totalorder %v170, 0
    %v174 = vand.u32 %v170, 2139095040
    %v175 = vshrl.u32 %v174, 23
    %v176 = vsub.s32 %v175, 127
    %v177 = vand.u32 2147483647, %v170
    %v178 = vand.u32 %v177, 8388607
    %v179 = vor.u32 %v178, 8388608
    %v180 = vsub.s32 0, %v179
    %v181 = vadd.s32 %v176, 1
    %vm182 = vcmp.gt.s32.totalorder %v181, 0
    %v183 = vsel %vm182, %v181, 0
    %v184 = vshrl.u32 %v183, 5
    %v185 = vand.u32 %v183, 31
    %v186 = vsub.s32 32, %v185
    %v187 = vshrl.u32 683565275, %v186
    %v188 = vshll.u32 683565275, %v185
    %v189 = vshrl.u32 2475754826, %v186
    %v190 = vor.u32 %v188, %v189
    %v191 = vshll.u32 2475754826, %v185
    %v192 = vshrl.u32 2131351028, %v186
    %v193 = vor.u32 %v191, %v192
    %v194 = vshll.u32 2131351028, %v185
    %v195 = vshrl.u32 2102212464, %v186
    %v196 = vor.u32 %v194, %v195
    %v197 = vshll.u32 2102212464, %v185
    %v198 = vshrl.u32 920167782, %v186
    %v199 = vor.u32 %v197, %v198
    %v200 = vshll.u32 920167782, %v185
    %v201 = vshrl.u32 1326507024, %v186
    %v202 = vor.u32 %v200, %v201
    %vm203 = vcmp.lt.s32.totalorder %v184, 1
    %vm204 = vcmp.lt.s32.totalorder %v184, 2
    %vm205 = vcmp.lt.s32.totalorder %v184, 3
    %vm206 = vcmp.lt.s32.totalorder %v184, 4
    %v207 = vsel %vm203, %v187, %v190
    %v208 = vsel %vm206, %v196, 2102212464
    %v209 = vsel %vm205, %v193, %v208
    %v210 = vsel %vm204, %v207, %v209
    %v211 = vsel %vm203, %v190, %v193
    %v212 = vsel %vm206, %v199, 920167782
    %v213 = vsel %vm205, %v196, %v212
    %v214 = vsel %vm204, %v211, %v213
    %v215 = vsel %vm203, %v193, %v196
    %v216 = vsel %vm206, %v202, 1326507024
    %v217 = vsel %vm205, %v199, %v216
    %v218 = vsel %vm204, %v215, %v217
    %v219 = vshll.u32 %v179, 8
    %v220 = vmul.u32.u64.compose %v219, %v218
    %v221 = vextract.low.u32 %v220
    %v222 = vextract.high.u32 %v220
    %v223 = vmul.u32.u64.compose %v219, %v214
    %v224 = vextract.low.u32 %v223
    %v225 = vextract.high.u32 %v223
    %v226 = vmul.u32 %v219, %v210
    %v227 = vadd.s32 %v222, %v224
    %vm228 = vc.u32 %v222, %v224
    %v229 = vadd.s32 %v225, 1
    %v230 = vsel %vm228, %v229, %v225
    %v231 = vadd.s32 %v226, %v230
    %v232 = vadd.s32 %v231, 536870912
    %v233 = vshrl.u32 %v232, 30
    %v234 = vshll.u32 %v233, 30
    %v235 = vsub.s32 %v231, %v234
    %vm236 = vcmp.lt.s32.totalorder %v235, 0
    %v237 = vsub.s32 0, %v235
    %v238 = vsel %vm236, %v237, %v235
    %v239 = vclz %v238
    %v240 = vsub.s32 %v239, 2
    %vm241 = vcmp.gt.s32.totalorder 0, %v240
    %v242 = vsel %vm241, 0, %v240
    %v243 = vsub.s32 32, %v242
    %v244 = vshll.u32 %v235, %v242
    %v245 = vshrl.u32 %v227, %v243
    %v246 = vor.u32 %v244, %v245
    %v247 = vsub.s32 4294967266, %v242
    %v248 = vadd.s32 %v247, 127
    %v249 = vshll.u32 %v248, 23
    %v250 = vor.u32 4788187, %v249
    %v251 = vand.u32 2147483647, %v250
    %v253 = vcvt.s32.f32 %v246
    %v254 = vmul.f32 %v253, %v251
    %v255 = vxor.u32 %v254, 2147483648
    %v256 = vsel %vm173, %v255, %v254
    %v257 = vsub.s32 4, %v233
    %v258 = vsel %vm173, %v257, %v233
    %v259 = vsel %vm172, %v170, %v256
    %v260 = vsel %vm172, 0, %v258
    %v261 = vcosq.f32.pop %v259
    %v262 = vsinq.f32.pop %v259
    %vm263 = vweird.f32 %v170
    %v264 = vand.u32 %v260, 3
    %vm265 = vcmp.lt.s32.totalorder %v264, 2
    %vm266 = vcmp.eq.s32.totalorder %v264, 0
    %v267 = vxor.u32 %v262, 2147483648
    %v268 = vsel %vm266, %v261, %v267
    %vm269 = vcmp.eq.s32.totalorder %v264, 2
    %v270 = vxor.u32 %v261, 2147483648
    %v271 = vsel %vm269, %v270, %v262
    %v272 = vsel %vm265, %v268, %v271
    %v273 = vsel %vm263, nan, %v272
    %v274 = vadd.f32 %v273, 1.0
    %v275 = vmul.f32 %v274, 0.5
    %v276 = vmul.f32 %v168, 2.0
    %v277 = vmul.f32 %v276, %v275
    %v278 = vmul.f32 %v55, 0.95
    %v279 = vmul.f32 %v56, %v57
    %v280 = vmul.f32 %v278, %v279
    %v281 = vmul.f32 %v280, %v280
    %v282 = vsub.f32 1.0, %v281
    %v283 = vmax.f32 %v282, 0.0
    %v284 = vrsqrt.pop %v283
    %v285 = vmul.f32 %v283, %v284
    %vm286 = vcmp.eq.f32.partialorder %v283, inf
    %v287 = vsel %vm286, %v283, %v285
    %vm288 = vcmp.eq.f32.partialorder %v283, 0.0
    %v289 = vand.u32 %v283, 2147483648
    %v290 = vsel %vm288, %v289, %v287
    %v291 = vmul.f32 %v280, 0.9238795
    %v292 = vmul.f32 %v290, 0.38268343
    %v293 = vadd.f32 %v291, %v292
    %v294 = vadd.f32 %v293, 1.0
    %v295 = vmul.f32 %v294, 0.5
    %v296 = vmax.f32 %v295, 1e-30
    %v297 = vlog2.pop %v296
    %v298 = vmul.f32 %v297, 0.6931472
    %v299 = vmul.f32 %v298, 14.1
    %v300 = vmul.f32 %v299, 1.442695
    %v301 = vpow.pop %v300
    %v302 = vmul.f32 %v301, %v277
    %v303 = vmul.f32 %v280, 0.38268343
    %v304 = vmul.f32 %v290, 0.9238795
    %v305 = vadd.f32 %v303, %v304
    %v306 = vadd.f32 %v305, 1.0
    %v307 = vmul.f32 %v306, 0.5
    %v308 = vmax.f32 %v307, 1e-30
    %v309 = vlog2.pop %v308
    %v310 = vmul.f32 %v309, 0.6931472
    %v311 = vmul.f32 %v310, 14.1
    %v312 = vmul.f32 %v311, 1.442695
    %v313 = vpow.pop %v312
    %v314 = vmul.f32 %v313, %v277
    %v315 = vmul.f32 %v280, -0.38268343
    %v316 = vadd.f32 %v315, %v304
    %v317 = vadd.f32 %v316, 1.0
    %v318 = vmul.f32 %v317, 0.5
    %v319 = vmax.f32 %v318, 1e-30
    %v320 = vlog2.pop %v319
    %v321 = vmul.f32 %v320, 0.6931472
    %v322 = vmul.f32 %v321, 14.1
    %v323 = vmul.f32 %v322, 1.442695
    %v324 = vpow.pop %v323
    %v325 = vmul.f32 %v324, %v277
    %v326 = vmul.f32 %v280, -0.9238795
    %v327 = vadd.f32 %v326, %v292
    %v328 = vadd.f32 %v327, 1.0
    %v329 = vmul.f32 %v328, 0.5
    %v330 = vmax.f32 %v329, 1e-30
    %v331 = vlog2.pop %v330
    %v332 = vmul.f32 %v331, 0.6931472
    %v333 = vmul.f32 %v332, 14.1
    %v334 = vmul.f32 %v333, 1.442695
    %v335 = vpow.pop %v334
    %v336 = vmul.f32 %v335, %v277
    %v337 = vsub.f32 %v61, 0.05
    %v338 = vmul.f32 %v337, -1250.0
    %v339 = vmul.f32 %v338, %v337
    %v340 = vmul.f32 %v339, 1.442695
    %v341 = vpow.pop %v340
    %v342 = vmul.f32 %v302, %v341
    %343 = vst [vmem:[#allocation5] sm:$0xff] %v342
    %v344 = vmul.f32 %v314, %v341
    %s345 = scalar_lea.vmem [#allocation5], %s24
    %346 = vst [vmem:[%s345] sm:$0xff] %v344
    %v347 = vmul.f32 %v325, %v341
    %s348 = scalar_lea.vmem [#allocation5], %s27
    %349 = vst [vmem:[%s348] sm:$0xff] %v347
    %v350 = vmul.f32 %v336, %v341
    %s351 = scalar_lea.vmem [#allocation5], %s30
    %352 = vst [vmem:[%s351] sm:$0xff] %v350
    %v353 = vsub.f32 %v61, 0.10625
    %v354 = vmul.f32 %v353, -1250.0
    %v355 = vmul.f32 %v354, %v353
    %v356 = vmul.f32 %v355, 1.442695
    %v357 = vpow.pop %v356
    %v358 = vmul.f32 %v302, %v357
    %s359 = scalar_lea.vmem [#allocation5], %s33
    %360 = vst [vmem:[%s359] sm:$0xff] %v358
    %v361 = vmul.f32 %v314, %v357
    %s362 = scalar_lea.vmem [#allocation5], %s36
    %363 = vst [vmem:[%s362] sm:$0xff] %v361
    %v364 = vmul.f32 %v325, %v357
    %s365 = sadd.s32 0, 48
    %s366 = scalar_lea.vmem [#allocation5], %s365
    %367 = vst [vmem:[%s366] sm:$0xff] %v364
    %v368 = vmul.f32 %v336, %v357
    %s369 = sadd.s32 0, 56
    %s370 = scalar_lea.vmem [#allocation5], %s369
    %371 = vst [vmem:[%s370] sm:$0xff] %v368
    %v372 = vsub.f32 %v61, 0.1625
    %v373 = vmul.f32 %v372, -1250.0
    %v374 = vmul.f32 %v373, %v372
    %v375 = vmul.f32 %v374, 1.442695
    %v376 = vpow.pop %v375
    %v377 = vmul.f32 %v302, %v376
    %s378 = sadd.s32 0, 64
    %s379 = scalar_lea.vmem [#allocation5], %s378
    %380 = vst [vmem:[%s379] sm:$0xff] %v377
    %v381 = vmul.f32 %v314, %v376
    %s382 = sadd.s32 0, 72
    %s383 = scalar_lea.vmem [#allocation5], %s382
    %384 = vst [vmem:[%s383] sm:$0xff] %v381
    %v385 = vmul.f32 %v325, %v376
    %s386 = sadd.s32 0, 80
    %s387 = scalar_lea.vmem [#allocation5], %s386
    %388 = vst [vmem:[%s387] sm:$0xff] %v385
    %v389 = vmul.f32 %v336, %v376
    %s390 = sadd.s32 0, 88
    %s391 = scalar_lea.vmem [#allocation5], %s390
    %392 = vst [vmem:[%s391] sm:$0xff] %v389
    %v393 = vsub.f32 %v61, 0.21875
    %v394 = vmul.f32 %v393, -1250.0
    %v395 = vmul.f32 %v394, %v393
    %v396 = vmul.f32 %v395, 1.442695
    %v397 = vpow.pop %v396
    %v398 = vmul.f32 %v302, %v397
    %s399 = sadd.s32 0, 96
    %s400 = scalar_lea.vmem [#allocation5], %s399
    %401 = vst [vmem:[%s400] sm:$0xff] %v398
    %v402 = vmul.f32 %v314, %v397
    %s403 = sadd.s32 0, 104
    %s404 = scalar_lea.vmem [#allocation5], %s403
    %405 = vst [vmem:[%s404] sm:$0xff] %v402
    %v406 = vmul.f32 %v325, %v397
    %s407 = sadd.s32 0, 112
    %s408 = scalar_lea.vmem [#allocation5], %s407
    %409 = vst [vmem:[%s408] sm:$0xff] %v406
    %v410 = vmul.f32 %v336, %v397
    %s411 = sadd.s32 0, 120
    %s412 = scalar_lea.vmem [#allocation5], %s411
    %413 = vst [vmem:[%s412] sm:$0xff] %v410
    %v414 = vsub.f32 %v61, 0.275
    %v415 = vmul.f32 %v414, -1250.0
    %v416 = vmul.f32 %v415, %v414
    %v417 = vmul.f32 %v416, 1.442695
    %v418 = vpow.pop %v417
    %v419 = vmul.f32 %v302, %v418
    %s420 = sadd.s32 0, 128
    %s421 = scalar_lea.vmem [#allocation5], %s420
    %422 = vst [vmem:[%s421] sm:$0xff] %v419
    %v423 = vmul.f32 %v314, %v418
    %s424 = sadd.s32 0, 136
    %s425 = scalar_lea.vmem [#allocation5], %s424
    %426 = vst [vmem:[%s425] sm:$0xff] %v423
    %v427 = vmul.f32 %v325, %v418
    %s428 = sadd.s32 0, 144
    %s429 = scalar_lea.vmem [#allocation5], %s428
    %430 = vst [vmem:[%s429] sm:$0xff] %v427
    %v431 = vmul.f32 %v336, %v418
    %s432 = sadd.s32 0, 152
    %s433 = scalar_lea.vmem [#allocation5], %s432
    %434 = vst [vmem:[%s433] sm:$0xff] %v431
    %v435 = vsub.f32 %v61, 0.33125
    %v436 = vmul.f32 %v435, -1250.0
    %v437 = vmul.f32 %v436, %v435
    %v438 = vmul.f32 %v437, 1.442695
    %v439 = vpow.pop %v438
    %v440 = vmul.f32 %v302, %v439
    %s441 = sadd.s32 0, 160
    %s442 = scalar_lea.vmem [#allocation5], %s441
    %443 = vst [vmem:[%s442] sm:$0xff] %v440
    %v444 = vmul.f32 %v314, %v439
    %s445 = sadd.s32 0, 168
    %s446 = scalar_lea.vmem [#allocation5], %s445
    %447 = vst [vmem:[%s446] sm:$0xff] %v444
    %v448 = vmul.f32 %v325, %v439
    %s449 = sadd.s32 0, 176
    %s450 = scalar_lea.vmem [#allocation5], %s449
    %451 = vst [vmem:[%s450] sm:$0xff] %v448
    %v452 = vmul.f32 %v336, %v439
    %s453 = sadd.s32 0, 184
    %s454 = scalar_lea.vmem [#allocation5], %s453
    %455 = vst [vmem:[%s454] sm:$0xff] %v452
    %v456 = vsub.f32 %v61, 0.3875
    %v457 = vmul.f32 %v456, -1250.0
    %v458 = vmul.f32 %v457, %v456
    %v459 = vmul.f32 %v458, 1.442695
    %v460 = vpow.pop %v459
    %v461 = vmul.f32 %v302, %v460
    %s462 = sadd.s32 0, 192
    %s463 = scalar_lea.vmem [#allocation5], %s462
    %464 = vst [vmem:[%s463] sm:$0xff] %v461
    %v465 = vmul.f32 %v314, %v460
    %s466 = sadd.s32 0, 200
    %s467 = scalar_lea.vmem [#allocation5], %s466
    %468 = vst [vmem:[%s467] sm:$0xff] %v465
    %v469 = vmul.f32 %v325, %v460
    %s470 = sadd.s32 0, 208
    %s471 = scalar_lea.vmem [#allocation5], %s470
    %472 = vst [vmem:[%s471] sm:$0xff] %v469
    %v473 = vmul.f32 %v336, %v460
    %s474 = sadd.s32 0, 216
    %s475 = scalar_lea.vmem [#allocation5], %s474
    %476 = vst [vmem:[%s475] sm:$0xff] %v473
    %v477 = vsub.f32 %v61, 0.44375
    %v478 = vmul.f32 %v477, -1250.0
    %v479 = vmul.f32 %v478, %v477
    %v480 = vmul.f32 %v479, 1.442695
    %v481 = vpow.pop %v480
    %v482 = vmul.f32 %v302, %v481
    %s483 = sadd.s32 0, 224
    %s484 = scalar_lea.vmem [#allocation5], %s483
    %485 = vst [vmem:[%s484] sm:$0xff] %v482
    %v486 = vmul.f32 %v314, %v481
    %s487 = sadd.s32 0, 232
    %s488 = scalar_lea.vmem [#allocation5], %s487
    %489 = vst [vmem:[%s488] sm:$0xff] %v486
    %v490 = vmul.f32 %v325, %v481
    %s491 = sadd.s32 0, 240
    %s492 = scalar_lea.vmem [#allocation5], %s491
    %493 = vst [vmem:[%s492] sm:$0xff] %v490
    %v494 = vmul.f32 %v336, %v481
    %s495 = sadd.s32 0, 248
    %s496 = scalar_lea.vmem [#allocation5], %s495
    %497 = vst [vmem:[%s496] sm:$0xff] %v494
    // Predicated region
    $region10: #{tpu_custom_call.1} parent=1 // pred_check
      _
    $region11: #{tpu_custom_call.1} parent=1 // pred_check_branch
      %499 = sbr.rel (0) target = $region13
    $region12: #{tpu_custom_call.1} parent=1 // pred_region
      %s501 = ssub.s32 4096, 4096
      %502 = vsyncadd [#allocation4], %s501
      %s503 = sshll.u32 [#allocation5], 4
      %s504 = int_to_ptr.vmem [resolvable:$true] %s503
      %509 = dma.vmem_to_hbm [thread:$0]  %s504, 4096, %s1, [#allocation4], 128, 128, 8
    $region13: #{tpu_custom_call.1} parent=1 // pred_fallthru
      _
    // Predicated region
    $region14: #{tpu_custom_call.1} parent=1 // pred_check
      _
    $region15: #{tpu_custom_call.1} parent=1 // pred_check_branch
      %511 = sbr.rel (0) target = $region17
    $region16: #{tpu_custom_call.1} parent=1 // pred_region
      %512 = dma.done [#allocation4], 4096
    $region17: #{tpu_custom_call.1} parent=1 // pred_fallthru
      _
    %513 = vsyncpa [#allocation3], 1
    %514 = vsyncpa [#allocation4], 1

</llo_original>
